<compile_context>
chip_gen: v6e
topology: v6e:2x2x1
jax: 0.10.0
libtpu: 0.0.40
codegen_flags: <defaults>
</compile_context>

<pallas_src>
import functools

import numpy as np
import jax
import jax.numpy as jnp
from jax import lax
from jax.experimental import pallas as pl
from jax.experimental.pallas import tpu as pltpu


def _round_up(v: int, m: int) -> int:
    return ((v + m - 1) // m) * m


def _pick_tile(n: int, d_aug: int) -> int:
    """Largest VMEM-safe tile, adjusted to minimize padded triangular work."""
    if d_aug <= 256:
        max_tile = 1024
    elif d_aug <= 1024:
        max_tile = 512
    else:
        max_tile = 256
    max_tile = min(max_tile, _round_up(max(n, 1), 128))

    best_tile, best_key = 128, None
    t = 128
    while t <= max_tile:
        steps = -(-n // t)
        tri = steps * (steps + 1) // 2
        # padded work + per-step overhead proxy (~one 128x128 block per step);
        # ties broken toward larger tiles (fewer grid steps).
        key = (tri * t * t + tri * 128 * 128, -t)
        if best_key is None or key < best_key:
            best_key, best_tile = key, t
        t += 128
    return best_tile


def _cond_mmd_tri_kernel(row_ref, col_ref, xr_ref, xcT_ref, ci_ref, cj_ref,
                         o_ref, *, inv_d2):
    """One lower-triangular (TILE x TILE) block of K, contracted to (C, C).

    row_ref/col_ref: (S,) int32 SMEM prefetch — tile coordinates per grid step
    xr_ref : (TILE, D_aug) f32   row-role augmented x rows for this row tile
    xcT_ref: (D_aug, TILE) f32   col-role augmented x (pre-transposed)
    ci_ref : (1, TILE) int32     condition ids of the row tile
    cj_ref : (TILE, 1) int32     condition ids of the col tile
    o_ref  : (1, C_pad, C_pad) f32  per-row-tile accumulator (resident per row)
    """
    t = pl.program_id(0)
    rt = row_ref[t]
    ct = col_ref[t]

    @pl.when(ct == 0)
    def _init():
        o_ref[...] = jnp.zeros_like(o_ref)

    c_pad = o_ref.shape[1]
    tm = xr_ref.shape[0]
    tn = xcT_ref.shape[1]

    # Augmented-column gram: [x,|x|^2,1]·[-2x,1,|x|^2]^T == ||x_p - x_q||^2.
    sqdist = jnp.maximum(
        jnp.dot(xr_ref[...], xcT_ref[...], preferred_element_type=jnp.float32),
        0.0)                                                    # (tm, tn)
    # gaussian_kernel: exp(-mean_d(diff^2)/D) = exp(-sqdist / D^2)
    k = jnp.exp(-sqdist * inv_d2)                               # (tm, tn)

    # One-hot condition membership built in-kernel (VPU compare, no HBM DMA).
    m_i = (lax.broadcasted_iota(jnp.int32, (c_pad, tm), 0)
           == ci_ref[...]).astype(jnp.float32)                  # (c_pad, tm)
    m_jT = (lax.broadcasted_iota(jnp.int32, (tn, c_pad), 1)
            == cj_ref[...]).astype(jnp.float32)                 # (tn, c_pad)

    mk = jnp.dot(m_i, k, preferred_element_type=jnp.float32)          # (c_pad, tn)
    partial = jnp.dot(mk, m_jT, preferred_element_type=jnp.float32)   # (c_pad, c_pad)

    # Off-diagonal tile also stands in for its mirrored (ct, rt) block.
    mirror = (ct < rt).astype(jnp.float32)
    o_ref[...] = o_ref[...] + (partial + mirror * partial.T)[None, :, :]


def conditional_mmd_loss(x: jax.Array, c: jax.Array, n_conditions: int,
                         tile: int | None = None) -> jax.Array:
    """Pallas-backed equivalent of ConditionalMMDLoss.forward(x, c)."""
    x = jnp.asarray(x, jnp.float32)
    c = jnp.asarray(c)
    n, d = x.shape
    cnum = int(n_conditions)

    # The loss only depends on pairwise differences -> translation invariant.
    # Centering tames f32 cancellation in the gram-style squared distance.
    x = x - jnp.mean(x, axis=0, keepdims=True)

    d_aug = _round_up(d + 2, 128)              # room for the 2 augmented cols
    c_pad = _round_up(max(cnum, 1), 8)

    if tile is None:
        tile = _pick_tile(n, d_aug)
    tile = max(128, _round_up(int(tile), 128))
    tile = min(tile, _round_up(n, 128))
    n_pad = _round_up(n, tile)
    num_tiles = n_pad // tile

    # Augmented row-role and (transposed) col-role copies of x.
    sq = jnp.sum(x * x, axis=1, keepdims=True)                    # (n, 1)
    ones = jnp.ones((n, 1), jnp.float32)
    row_aug = jnp.concatenate([x, sq, ones], axis=1)              # (n, d+2)
    col_aug = jnp.concatenate([-2.0 * x, ones, sq], axis=1)       # (n, d+2)
    x_row = jnp.pad(row_aug, ((0, n_pad - n), (0, d_aug - (d + 2))))
    x_colT = jnp.pad(col_aug, ((0, n_pad - n), (0, d_aug - (d + 2)))).T

    # Condition ids; padded batch rows get an id that never matches [0, c_pad).
    c_ids = jnp.pad(c.astype(jnp.int32), (0, n_pad - n), constant_values=c_pad)
    c_row = c_ids[None, :]                                        # (1, n_pad)
    c_col = c_ids[:, None]                                        # (n_pad, 1)

    # Triangular (j <= i) tile enumeration, row-major (static, prefetched).
    tri = [(i, j) for i in range(num_tiles) for j in range(i + 1)]
    row_idx = jnp.asarray(np.array([p[0] for p in tri], dtype=np.int32))
    col_idx = jnp.asarray(np.array([p[1] for p in tri], dtype=np.int32))
    num_steps = len(tri)

    # Advisory cost: transcendental-heavy (~N^2/2 exp after symmetry).
    cost = pl.CostEstimate(
        flops=num_steps * (2 * tile * tile * d_aug
                           + 2 * c_pad * tile * tile
                           + 2 * c_pad * c_pad * tile),
        transcendentals=num_steps * tile * tile,
        bytes_accessed=(num_steps * (tile * d_aug + 2 * tile) * 4
                        + num_tiles * (tile * d_aug + c_pad * c_pad) * 4),
    )

    vmem_limit = 48 * 1024 * 1024 if tile >= 1024 else 32 * 1024 * 1024
    kernel = functools.partial(_cond_mmd_tri_kernel, inv_d2=1.0 / float(d * d))

    s_parts = pl.pallas_call(
        kernel,
        out_shape=jax.ShapeDtypeStruct((num_tiles, c_pad, c_pad), jnp.float32),
        grid_spec=pltpu.PrefetchScalarGridSpec(
            num_scalar_prefetch=2,
            grid=(num_steps,),
            in_specs=[
                pl.BlockSpec((tile, d_aug), lambda t, rt, ct: (rt[t], 0)),   # x rows (i)
                pl.BlockSpec((d_aug, tile), lambda t, rt, ct: (0, ct[t])),   # x cols (j), pre-T
                pl.BlockSpec((1, tile),     lambda t, rt, ct: (0, rt[t])),   # ids (i)
                pl.BlockSpec((tile, 1),     lambda t, rt, ct: (ct[t], 0)),   # ids (j)
            ],
            out_specs=pl.BlockSpec((1, c_pad, c_pad),
                                   lambda t, rt, ct: (rt[t], 0, 0)),
        ),
        compiler_params=pltpu.CompilerParams(
            dimension_semantics=("arbitrary",),
            vmem_limit_bytes=vmem_limit,
        ),
        cost_estimate=cost,
    )(row_idx, col_idx, x_row, x_colT, c_row, c_col)

    # Tiny (C, C) combination: divide by counts, sum strictly-lower pairs.
    s = jnp.sum(s_parts, axis=0)[:cnum, :cnum]                    # symmetric S
    counts = jnp.sum(
        (c.astype(jnp.int32)[:, None] == jnp.arange(cnum, dtype=jnp.int32)[None, :]
         ).astype(jnp.float32), axis=0)                           # (C,)
    valid = counts > 0.0
    inv = jnp.where(valid, 1.0 / jnp.maximum(counts, 1.0), 0.0)

    diag_means = jnp.diagonal(s) * inv * inv                      # mean(K(p_i, p_i))
    cross_means = s * inv[:, None] * inv[None, :]                 # mean(K(p_i, p_j))

    validf = valid.astype(jnp.float32)
    pair_mask = jnp.tril(jnp.ones((cnum, cnum), jnp.float32), k=-1) \
        * validf[:, None] * validf[None, :]
    terms = diag_means[:, None] + diag_means[None, :] - 2.0 * cross_means
    return jnp.sum(pair_mask * terms)


# ----------------------- pure-numpy reference (torch semantics) ----------------
def _ref_gaussian_kernel(a, b):
    d = a.shape[1]
    diff = a[:, None, :] - b[None, :, :]
    return np.exp(-(diff ** 2).mean(2) / float(d))


def _ref_conditional_mmd(x, c, n_conditions):
    x = np.asarray(x, dtype=np.float64)
    c = np.asarray(c)
    parts = [x[c == i] for i in range(n_conditions)]
    loss = 0.0
    for i in range(len(parts)):
        if parts[i].shape[0] > 0:
            for j in range(i):
                if parts[j].shape[0] > 0:
                    loss += (_ref_gaussian_kernel(parts[i], parts[i]).mean()
                             + _ref_gaussian_kernel(parts[j], parts[j]).mean()
                             - 2.0 * _ref_gaussian_kernel(parts[i], parts[j]).mean())
    return loss


if __name__ == "__main__":
    key = jax.random.PRNGKey(0)
    kx, kc = jax.random.split(key)

    batch, features, n_conditions = 16, 32, 4
    x = jax.random.normal(kx, (batch, features), dtype=jnp.float32)
    c = jax.random.randint(kc, (batch,), 0, n_conditions, dtype=jnp.int32)

    loss = conditional_mmd_loss(x, c, n_conditions)
    loss = jax.block_until_ready(loss)
    ref = _ref_conditional_mmd(np.asarray(x), np.asarray(c), n_conditions)
    assert np.allclose(float(loss), ref, rtol=1e-4, atol=1e-4), (float(loss), ref)

    # Empty-condition partitions must contribute nothing (conditions 4, 5 empty).
    n_conditions2 = 6
    loss2 = jax.block_until_ready(conditional_mmd_loss(x, c, n_conditions2))
    ref2 = _ref_conditional_mmd(np.asarray(x), np.asarray(c), n_conditions2)
    assert np.allclose(float(loss2), ref2, rtol=1e-4, atol=1e-4), (float(loss2), ref2)

    print("KERNEL_OK")
</pallas_src>

<mosaic_0001>
module attributes {stable_mosaic.version = 11 : i64} {
  func.func @_cond_mmd_tri_kernel(%arg0: i32, %arg1: memref<1xi32, #tpu.memory_space<smem>>, %arg2: memref<1xi32, #tpu.memory_space<smem>>, %arg3: memref<128x128xf32, #tpu.memory_space<vmem>>, %arg4: memref<128x128xf32, #tpu.memory_space<vmem>>, %arg5: memref<1x128xi32, #tpu.memory_space<vmem>>, %arg6: memref<128x1xi32, #tpu.memory_space<vmem>>, %arg7: memref<1x8x8xf32, #tpu.memory_space<vmem>>) attributes {dimension_semantics = [#tpu.dimension_semantics<arbitrary>], iteration_bounds = array<i64: 1>, scalar_prefetch = 2 : i64, scratch_operands = 0 : i64, tpu.core_type = #tpu.core_type<tc>, window_params = [{transform_indices = @transform_0, window_bounds = array<i64: 128, 128>}, {transform_indices = @transform_1, window_bounds = array<i64: 128, 128>}, {transform_indices = @transform_2, window_bounds = array<i64: 1, 128>}, {transform_indices = @transform_3, window_bounds = array<i64: 128, 1>}, {transform_indices = @transform_4, window_bounds = array<i64: 1, 8, 8>}]} {
    %0 = arith.index_cast %arg0 : i32 to index
    %1 = memref.load %arg1[%0] : memref<1xi32, #tpu.memory_space<smem>>
    %2 = arith.index_cast %arg0 : i32 to index
    %3 = memref.load %arg2[%2] : memref<1xi32, #tpu.memory_space<smem>>
    %c0_i32 = arith.constant 0 : i32
    %4 = arith.cmpi eq, %3, %c0_i32 : i32
    %5 = arith.extui %4 : i1 to i32
    %c0_i32_0 = arith.constant 0 : i32
    %6 = arith.cmpi ne, %5, %c0_i32_0 : i32
    scf.if %6 {
      %cst_19 = arith.constant 0.000000e+00 : f32
      %42 = vector.broadcast %cst_19 : f32 to vector<1x8x8xf32>
      %c0_20 = arith.constant 0 : index
      %c0_21 = arith.constant 0 : index
      %c0_22 = arith.constant 0 : index
      %43 = vector.load %arg7[%c0_20, %c0_21, %c0_22] : memref<1x8x8xf32, #tpu.memory_space<vmem>>, vector<1x8x8xf32>
      tpu.vector_store %arg7[%c0_20, %c0_21, %c0_22], %42 {strides = array<i32>} : memref<1x8x8xf32, #tpu.memory_space<vmem>>, vector<1x8x8xf32>,
    } else {
    }
    %c0 = arith.constant 0 : index
    %c0_1 = arith.constant 0 : index
    %7 = vector.load %arg3[%c0, %c0_1] : memref<128x128xf32, #tpu.memory_space<vmem>>, vector<128x128xf32>
    %c0_2 = arith.constant 0 : index
    %c0_3 = arith.constant 0 : index
    %8 = vector.load %arg4[%c0_2, %c0_3] : memref<128x128xf32, #tpu.memory_space<vmem>>, vector<128x128xf32>
    %cst = arith.constant dense<0.000000e+00> : vector<128x128xf32>
    %9 = tpu.matmul %7, %8, %cst {dimension_numbers = #tpu.dot_dimension_numbers<[1], [0], [0], [1], [0, 0, 1, 1], [], []>} : vector<128x128xf32>, vector<128x128xf32>, vector<128x128xf32> -> vector<128x128xf32>
    %cst_4 = arith.constant 0.000000e+00 : f32
    %10 = vector.broadcast %cst_4 : f32 to vector<128x128xf32>
    %11 = arith.maximumf %9, %10 : vector<128x128xf32>
    %cst_5 = arith.constant 0.000000e+00 : f32
    %12 = vector.broadcast %cst_5 : f32 to vector<128x128xf32>
    %13 = arith.subf %12, %11 : vector<128x128xf32>
    %cst_6 = arith.constant 9.765625E-4 : f32
    %14 = vector.broadcast %cst_6 : f32 to vector<128x128xf32>
    %15 = arith.mulf %13, %14 : vector<128x128xf32>
    %16 = math.exp %15 : vector<128x128xf32>
    %17 = tpu.iota {dimensions = array<i32: 0>} : vector<8x128xi32>
    %c0_7 = arith.constant 0 : index
    %c0_8 = arith.constant 0 : index
    %18 = vector.load %arg5[%c0_7, %c0_8] : memref<1x128xi32, #tpu.memory_space<vmem>>, vector<1x128xi32>
    %19 = vector.broadcast %18 : vector<1x128xi32> to vector<8x128xi32>
    %20 = arith.cmpi eq, %17, %19 : vector<8x128xi32>
    %21 = arith.extui %20 : vector<8x128xi1> to vector<8x128xi32>
    %22 = arith.sitofp %21 : vector<8x128xi32> to vector<8x128xf32>
    %23 = tpu.iota {dimensions = array<i32: 1>} : vector<128x8xi32>
    %c0_9 = arith.constant 0 : index
    %c0_10 = arith.constant 0 : index
    %24 = vector.load %arg6[%c0_9, %c0_10] : memref<128x1xi32, #tpu.memory_space<vmem>>, vector<128x1xi32>
    %25 = vector.broadcast %24 : vector<128x1xi32> to vector<128x8xi32>
    %26 = arith.cmpi eq, %23, %25 : vector<128x8xi32>
    %27 = arith.extui %26 : vector<128x8xi1> to vector<128x8xi32>
    %28 = arith.sitofp %27 : vector<128x8xi32> to vector<128x8xf32>
    %cst_11 = arith.constant dense<0.000000e+00> : vector<8x128xf32>
    %29 = tpu.matmul %22, %16, %cst_11 {dimension_numbers = #tpu.dot_dimension_numbers<[1], [0], [0], [1], [0, 0, 1, 1], [], []>} : vector<8x128xf32>, vector<128x128xf32>, vector<8x128xf32> -> vector<8x128xf32>
    %cst_12 = arith.constant dense<0.000000e+00> : vector<8x8xf32>
    %30 = tpu.matmul %29, %28, %cst_12 {dimension_numbers = #tpu.dot_dimension_numbers<[1], [0], [0], [1], [0, 0, 1, 1], [], []>} : vector<8x128xf32>, vector<128x8xf32>, vector<8x8xf32> -> vector<8x8xf32>
    %31 = arith.cmpi slt, %3, %1 : i32
    %32 = arith.extui %31 : i1 to i32
    %33 = arith.sitofp %32 : i32 to f32
    %c0_13 = arith.constant 0 : index
    %c0_14 = arith.constant 0 : index
    %c0_15 = arith.constant 0 : index
    %34 = vector.load %arg7[%c0_13, %c0_14, %c0_15] : memref<1x8x8xf32, #tpu.memory_space<vmem>>, vector<1x8x8xf32>
    %35 = tpu.transpose %30, [1, 0] : vector<8x8xf32> -> vector<8x8xf32>
    %36 = vector.broadcast %33 : f32 to vector<8x8xf32>
    %37 = arith.mulf %36, %35 : vector<8x8xf32>
    %38 = arith.addf %30, %37 : vector<8x8xf32>
    %39 = vector.shape_cast %38 : vector<8x8xf32> to vector<1x8x8xf32>
    %40 = arith.addf %34, %39 : vector<1x8x8xf32>
    %c0_16 = arith.constant 0 : index
    %c0_17 = arith.constant 0 : index
    %c0_18 = arith.constant 0 : index
    %41 = vector.load %arg7[%c0_16, %c0_17, %c0_18] : memref<1x8x8xf32, #tpu.memory_space<vmem>>, vector<1x8x8xf32>
    tpu.vector_store %arg7[%c0_16, %c0_17, %c0_18], %40 {strides = array<i32>} : memref<1x8x8xf32, #tpu.memory_space<vmem>>, vector<1x8x8xf32>,
    return
  }
  func.func @transform_0(%arg0: i32, %arg1: memref<1xi32, #tpu.memory_space<smem>>, %arg2: memref<1xi32, #tpu.memory_space<smem>>) -> (i32, i32) {
    %0 = arith.index_cast %arg0 : i32 to index
    %1 = memref.load %arg1[%0] : memref<1xi32, #tpu.memory_space<smem>>
    %c0_i32 = arith.constant 0 : i32
    %c0_i32_0 = arith.constant 0 : i32
    return %1, %c0_i32 : i32, i32
  }
  func.func @transform_1(%arg0: i32, %arg1: memref<1xi32, #tpu.memory_space<smem>>, %arg2: memref<1xi32, #tpu.memory_space<smem>>) -> (i32, i32) {
    %0 = arith.index_cast %arg0 : i32 to index
    %1 = memref.load %arg2[%0] : memref<1xi32, #tpu.memory_space<smem>>
    %c0_i32 = arith.constant 0 : i32
    %c0_i32_0 = arith.constant 0 : i32
    return %c0_i32, %1 : i32, i32
  }
  func.func @transform_2(%arg0: i32, %arg1: memref<1xi32, #tpu.memory_space<smem>>, %arg2: memref<1xi32, #tpu.memory_space<smem>>) -> (i32, i32) {
    %0 = arith.index_cast %arg0 : i32 to index
    %1 = memref.load %arg1[%0] : memref<1xi32, #tpu.memory_space<smem>>
    %c0_i32 = arith.constant 0 : i32
    %c0_i32_0 = arith.constant 0 : i32
    return %c0_i32, %1 : i32, i32
  }
  func.func @transform_3(%arg0: i32, %arg1: memref<1xi32, #tpu.memory_space<smem>>, %arg2: memref<1xi32, #tpu.memory_space<smem>>) -> (i32, i32) {
    %0 = arith.index_cast %arg0 : i32 to index
    %1 = memref.load %arg2[%0] : memref<1xi32, #tpu.memory_space<smem>>
    %c0_i32 = arith.constant 0 : i32
    %c0_i32_0 = arith.constant 0 : i32
    return %1, %c0_i32 : i32, i32
  }
  func.func @transform_4(%arg0: i32, %arg1: memref<1xi32, #tpu.memory_space<smem>>, %arg2: memref<1xi32, #tpu.memory_space<smem>>) -> (i32, i32, i32) {
    %0 = arith.index_cast %arg0 : i32 to index
    %1 = memref.load %arg1[%0] : memref<1xi32, #tpu.memory_space<smem>>
    %c0_i32 = arith.constant 0 : i32
    %c0_i32_0 = arith.constant 0 : i32
    %c0_i32_1 = arith.constant 0 : i32
    return %1, %c0_i32, %c0_i32_0 : i32, i32, i32
  }
}

</mosaic_0001>

<llo_original>
// kernel: tpu_custom_call.1
$region0: #{tpu_custom_call.1}
  #allocation0 [shape = 'u32[]', space=smem, size = 0x4, offset = 0x4, fixed_abs, tag = 'smem constant byte address 0x4 - core index']
  #allocation1 [shape = 'u32[144,128]{1,0:T(1,128)}', space=vmem, size = 0x12000, scoped, tag = 'internal scratch']
  #allocation2 [shape = 's32[1]{0}', space=sflag, size = 0x4, scoped, tag = 'scoped memory for tpu_custom_call.1']
  #allocation3 [shape = 's32[1]{0:T(128)S(6)}', space=smem, size = 0x200, scoped, tag = 'prefetched SMEM operand 0']
  #allocation4 [shape = 's32[1]{0:T(128)S(6)}', space=smem, size = 0x200, scoped, tag = 'prefetched SMEM operand 1']
  %s0 = inlined_call_operand.<no memory space> [shape: s32[1], index: 0, kind: input, shape index: {}]
  %s1 = inlined_call_operand.<no memory space> [shape: s32[1], index: 1, kind: input, shape index: {}]
  %s2 = inlined_call_operand.vmem [shape: f32[128,128], index: 2, kind: input, shape index: {}]
  %s3 = inlined_call_operand.hbm [shape: f32[128,128], index: 3, kind: input, shape index: {}]
  %s4 = inlined_call_operand.vmem [shape: s32[1,128], index: 4, kind: input, shape index: {}]
  %s5 = inlined_call_operand.vmem [shape: s32[128,1], index: 5, kind: input, shape index: {}]
  %s6 = inlined_call_operand.hbm [shape: f32[1,8,8], index: 6, kind: output, shape index: {}]
  %s7 = sld [smem:[#allocation0]]
  $region34: #{tpu_custom_call.1} parent=0
    _
  %s9 = ssub.s32 1, %s7
  %s10 = scalar_select 0, %s9, %s7
  %11 = sst [smem:[#allocation3]] %s0
  %12 = sst [smem:[#allocation4]] %s1
  $region1: #{tpu_custom_call.1} parent=0
    #allocation5 [shape = 'u8[65536]{0}', space=vmem, size = 0x10000, scoped, tag = 'input window, operand 3, single buffered']
    #allocation6 [shape = 's32[1]{0}', space=sflag, size = 0x4, scoped, tag = 'scoped memory for tpu_custom_call.1']
    #allocation7 [shape = 's32[1]{0}', space=sflag, size = 0x4, scoped, tag = 'scoped memory for tpu_custom_call.1']
    #allocation8 [shape = 'u8[4096]{0}', space=vmem, size = 0x1000, scoped, tag = 'output window, operand 0, single buffered']
    %13 = vsyncpa [#allocation6], 0
    %14 = vsyncpa [#allocation7], 0
    // Predicated region
    $region2: #{tpu_custom_call.1} parent=1 // pred_check
      _
    $region3: #{tpu_custom_call.1} parent=1 // pred_check_branch
      %16 = sbr.rel (0) target = $region5
    $region4: #{tpu_custom_call.1} parent=1 // pred_region
      %s17 = sld [smem:[#allocation3]]
      %s18 = smul.u32 16, %s17
      %p19 = scmp.lt.s32.totalorder %s18, 15
      %s20 = scalar_select %p19, %s18, 15
      %s21 = smul.addr %s20, 8
      %s22 = scalar_lea.vmem %s2, %s21
      %s23 = sld [smem:[#allocation3]]
      %s24 = smul.u32 16, %s23
    $region5: #{tpu_custom_call.1} parent=1 // pred_fallthru
      _
    // Predicated region
    $region6: #{tpu_custom_call.1} parent=1 // pred_check
      _
    $region7: #{tpu_custom_call.1} parent=1 // pred_check_branch
      %26 = sbr.rel (0) target = $region9
    $region8: #{tpu_custom_call.1} parent=1 // pred_region
      %s27 = sld [smem:[#allocation4]]
      %s29 = ssub.s32 2048, 2048
      %30 = vsyncadd [#allocation6], %s29
      %s31 = smul.addr %s27, 128
      %s32 = scalar_lea.hbm %s3, %s31
      %s33 = sshll.u32 [#allocation5], 4
      %s34 = int_to_ptr.vmem [resolvable:$true] %s33
      %39 = dma.hbm_to_vmem [thread:$0]  %s32, 2048, %s34, [#allocation6], 128, 128, 8
    $region9: #{tpu_custom_call.1} parent=1 // pred_fallthru
      _
    // Predicated region
    $region10: #{tpu_custom_call.1} parent=1 // pred_check
      _
    $region11: #{tpu_custom_call.1} parent=1 // pred_check_branch
      %41 = sbr.rel (0) target = $region13
    $region12: #{tpu_custom_call.1} parent=1 // pred_region
      %s42 = sld [smem:[#allocation3]]
      %p43 = scmp.lt.s32.totalorder %s42, 0
      %s44 = scalar_select %p43, %s42, 0
      %s45 = scalar_lea.vmem %s4, %s44
      %s46 = sld [smem:[#allocation3]]
    $region13: #{tpu_custom_call.1} parent=1 // pred_fallthru
      _
    // Predicated region
    $region14: #{tpu_custom_call.1} parent=1 // pred_check
      _
    $region15: #{tpu_custom_call.1} parent=1 // pred_check_branch
      %48 = sbr.rel (0) target = $region17
    $region16: #{tpu_custom_call.1} parent=1 // pred_region
      %s49 = sld [smem:[#allocation4]]
      %s50 = smul.u32 16, %s49
      %p51 = scmp.lt.s32.totalorder %s50, 15
      %s52 = scalar_select %p51, %s50, 15
      %s53 = smul.addr %s52, 8
      %s54 = scalar_lea.vmem %s5, %s53
      %s55 = sld [smem:[#allocation4]]
      %s56 = smul.u32 16, %s55
    $region17: #{tpu_custom_call.1} parent=1 // pred_fallthru
      _
    // Predicated region
    $region18: #{tpu_custom_call.1} parent=1 // pred_check
      _
    $region19: #{tpu_custom_call.1} parent=1 // pred_check_branch
      %58 = sbr.rel (0) target = $region21
    $region20: #{tpu_custom_call.1} parent=1 // pred_region
      %59 = dma.done [#allocation6], 2048
    $region21: #{tpu_custom_call.1} parent=1 // pred_fallthru
      _
    %s60 = sld [smem:[#allocation3]]
    %s61 = smul.u32 16, %s60
    %p62 = scmp.lt.s32.totalorder %s61, 15
    %s63 = scalar_select %p62, %s61, 15
    %s64 = smul.addr %s63, 8
    %s65 = scalar_lea.vmem %s2, %s64
    %s66 = sld [smem:[#allocation3]]
    %p67 = scmp.lt.s32.totalorder %s66, 0
    %s68 = scalar_select %p67, %s66, 0
    %s69 = scalar_lea.vmem %s4, %s68
    %s70 = sld [smem:[#allocation4]]
    %s71 = smul.u32 16, %s70
    %p72 = scmp.lt.s32.totalorder %s71, 15
    %s73 = scalar_select %p72, %s71, 15
    %s74 = smul.addr %s73, 8
    %s75 = scalar_lea.vmem %s5, %s74
    %s76 = sld [smem:[#allocation3]]
    %s77 = smul.u32 16, %s76
    %p78 = scmp.lt.s32.totalorder %s77, 15
    %s79 = scalar_select %p78, %s77, 15
    %s80 = smul.addr %s79, 8
    %s81 = scalar_lea.vmem %s2, %s80
    %s82 = sld [smem:[#allocation3]]
    %s83 = smul.u32 16, %s82
    %s84 = sld [smem:[#allocation4]]
    %s85 = sld [smem:[#allocation3]]
    %p86 = scmp.lt.s32.totalorder %s85, 0
    %s87 = scalar_select %p86, %s85, 0
    %s88 = scalar_lea.vmem %s4, %s87
    %s89 = sld [smem:[#allocation3]]
    %s90 = sld [smem:[#allocation4]]
    %s91 = smul.u32 16, %s90
    %p92 = scmp.lt.s32.totalorder %s91, 15
    %s93 = scalar_select %p92, %s91, 15
    %s94 = smul.addr %s93, 8
    %s95 = scalar_lea.vmem %s5, %s94
    %s96 = sld [smem:[#allocation4]]
    %s97 = smul.u32 16, %s96
    %s98 = sld [smem:[#allocation3]]
    %s99 = sld [smem:[#allocation3]]
    %s100 = sld [smem:[#allocation4]]
    %p101 = scmp.eq.s32.totalorder %s100, 0
    // Predicated region
    $region22: #{tpu_custom_call.1} parent=1 // pred_check
      %p102 = pneg %p101
    $region23: #{tpu_custom_call.1} parent=1 // pred_check_branch
      %104 = sbr.rel (%p102) target = $region25
    $region24: #{tpu_custom_call.1} parent=1 // pred_region
      %vm105 = vcmask 64512
      %106 = vst.msk [vmem:[#allocation8] sm:$0xff] %vm105, 0.0
    $region25: #{tpu_custom_call.1} parent=1 // pred_fallthru
      _
    %v107 = vld [vmem:[%s81] sm:$0xff]
    %v108 = vld [vmem:[%s81 + $0x8] sm:$0xff]
    %v109 = vld [vmem:[%s81 + $0x10] sm:$0xff]
    %v110 = vld [vmem:[%s81 + $0x18] sm:$0xff]
    %v111 = vld [vmem:[%s81 + $0x20] sm:$0xff]
    %v112 = vld [vmem:[%s81 + $0x28] sm:$0xff]
    %v113 = vld [vmem:[%s81 + $0x30] sm:$0xff]
    %v114 = vld [vmem:[%s81 + $0x38] sm:$0xff]
    %v115 = vld [vmem:[%s81 + $0x40] sm:$0xff]
    %v116 = vld [vmem:[%s81 + $0x48] sm:$0xff]
    %v117 = vld [vmem:[%s81 + $0x50] sm:$0xff]
    %v118 = vld [vmem:[%s81 + $0x58] sm:$0xff]
    %v119 = vld [vmem:[%s81 + $0x60] sm:$0xff]
    %v120 = vld [vmem:[%s81 + $0x68] sm:$0xff]
    %v121 = vld [vmem:[%s81 + $0x70] sm:$0xff]
    %v122 = vld [vmem:[%s81 + $0x78] sm:$0xff]
    %v123 = vld [vmem:[#allocation5] sm:$0xff]
    %v124 = vld [vmem:[#allocation5 + $0x8] sm:$0xff]
    %v125 = vld [vmem:[#allocation5 + $0x10] sm:$0xff]
    %v126 = vld [vmem:[#allocation5 + $0x18] sm:$0xff]
    %v127 = vld [vmem:[#allocation5 + $0x20] sm:$0xff]
    %v128 = vld [vmem:[#allocation5 + $0x28] sm:$0xff]
    %v129 = vld [vmem:[#allocation5 + $0x30] sm:$0xff]
    %v130 = vld [vmem:[#allocation5 + $0x38] sm:$0xff]
    %v131 = vld [vmem:[#allocation5 + $0x40] sm:$0xff]
    %v132 = vld [vmem:[#allocation5 + $0x48] sm:$0xff]
    %v133 = vld [vmem:[#allocation5 + $0x50] sm:$0xff]
    %v134 = vld [vmem:[#allocation5 + $0x58] sm:$0xff]
    %v135 = vld [vmem:[#allocation5 + $0x60] sm:$0xff]
    %v136 = vld [vmem:[#allocation5 + $0x68] sm:$0xff]
    %v137 = vld [vmem:[#allocation5 + $0x70] sm:$0xff]
    %v138 = vld [vmem:[#allocation5 + $0x78] sm:$0xff]
    %139 = vmatprep.subr.mxu0 0.0
    %140 = vmatpush1.msra.mxu0 %v138
    %141 = vmatprep.subr.mxu0 0.0
    %142 = vmatpush1.msra.mxu0 %v137
    %143 = vmatprep.subr.mxu0 0.0
    %144 = vmatpush1.msra.mxu0 %v136
    %145 = vmatprep.subr.mxu0 0.0
    %146 = vmatpush1.msra.mxu0 %v135
    %147 = vmatprep.subr.mxu0 0.0
    %148 = vmatpush1.msra.mxu0 %v134
    %149 = vmatprep.subr.mxu0 0.0
    %150 = vmatpush1.msra.mxu0 %v133
    %151 = vmatprep.subr.mxu0 0.0
    %152 = vmatpush1.msra.mxu0 %v132
    %153 = vmatprep.subr.mxu0 0.0
    %154 = vmatpush1.msra.mxu0 %v131
    %155 = vmatprep.subr.mxu0 0.0
    %156 = vmatpush1.msra.mxu0 %v130
    %157 = vmatprep.subr.mxu0 0.0
    %158 = vmatpush1.msra.mxu0 %v129
    %159 = vmatprep.subr.mxu0 0.0
    %160 = vmatpush1.msra.mxu0 %v128
    %161 = vmatprep.subr.mxu0 0.0
    %162 = vmatpush1.msra.mxu0 %v127
    %163 = vmatprep.subr.mxu0 0.0
    %164 = vmatpush1.msra.mxu0 %v126
    %165 = vmatprep.subr.mxu0 0.0
    %166 = vmatpush1.msra.mxu0 %v125
    %167 = vmatprep.subr.mxu0 0.0
    %168 = vmatpush1.msra.mxu0 %v124
    %169 = vmatprep.subr.mxu0 0.0
    %170 = vmatpush1.msra.mxu0 %v123
    %171 = vmatprep.subr.mxu0 0.0
    %172 = vmatpush2.msra.mxu0 0.0
    %173 = vmatprep.subr.mxu0 0.0
    %174 = vmatpush2.msra.mxu0 0.0
    %175 = vmatprep.subr.mxu0 0.0
    %176 = vmatpush2.msra.mxu0 0.0
    %177 = vmatprep.subr.mxu0 0.0
    %178 = vmatpush2.msra.mxu0 0.0
    %179 = vmatprep.subr.mxu0 0.0
    %180 = vmatpush2.msra.mxu0 0.0
    %181 = vmatprep.subr.mxu0 0.0
    %182 = vmatpush2.msra.mxu0 0.0
    %183 = vmatprep.subr.mxu0 0.0
    %184 = vmatpush2.msra.mxu0 0.0
    %185 = vmatprep.subr.mxu0 0.0
    %186 = vmatpush2.msra.mxu0 0.0
    %187 = vmatprep.subr.mxu0 0.0
    %188 = vmatpush2.msra.mxu0 0.0
    %189 = vmatprep.subr.mxu0 0.0
    %190 = vmatpush2.msra.mxu0 0.0
    %191 = vmatprep.subr.mxu0 0.0
    %192 = vmatpush2.msra.mxu0 0.0
    %193 = vmatprep.subr.mxu0 0.0
    %194 = vmatpush2.msra.mxu0 0.0
    %195 = vmatprep.subr.mxu0 0.0
    %196 = vmatpush2.msra.mxu0 0.0
    %197 = vmatprep.subr.mxu0 0.0
    %198 = vmatpush2.msra.mxu0 0.0
    %199 = vmatprep.subr.mxu0 0.0
    %200 = vmatpush2.msra.mxu0 0.0
    %201 = vmatprep.subr.mxu0 0.0
    %202 = vmatpush2.msra.mxu0 0.0
    %203 = vmatprep.mubr.f32.mxu0 0.0
    %204 = vmatmul.mubr.f32.gmra.mxu0 %v107
    %v205 = vpop.f32.mrf.mxu0
    %v206 = vadd.f32 0.0, %v205
    %v207 = vpop.f32.mrf.mxu0
    %208 = vmatprep.mubr.f32.mxu0 0.0
    %209 = vmatmul.mubr.f32.gmra.mxu0 %v108
    %v210 = vpop.f32.mrf.mxu0
    %v211 = vadd.f32 0.0, %v210
    %v212 = vpop.f32.mrf.mxu0
    %213 = vmatprep.mubr.f32.mxu0 0.0
    %214 = vmatmul.mubr.f32.gmra.mxu0 %v109
    %v215 = vpop.f32.mrf.mxu0
    %v216 = vadd.f32 0.0, %v215
    %v217 = vpop.f32.mrf.mxu0
    %218 = vmatprep.mubr.f32.mxu0 0.0
    %219 = vmatmul.mubr.f32.gmra.mxu0 %v110
    %v220 = vpop.f32.mrf.mxu0
    %v221 = vadd.f32 0.0, %v220
    %v222 = vpop.f32.mrf.mxu0
    %223 = vmatprep.mubr.f32.mxu0 0.0
    %224 = vmatmul.mubr.f32.gmra.mxu0 %v111
    %v225 = vpop.f32.mrf.mxu0
    %v226 = vadd.f32 0.0, %v225
    %v227 = vpop.f32.mrf.mxu0
    %228 = vmatprep.mubr.f32.mxu0 0.0
    %229 = vmatmul.mubr.f32.gmra.mxu0 %v112
    %v230 = vpop.f32.mrf.mxu0
    %v231 = vadd.f32 0.0, %v230
    %v232 = vpop.f32.mrf.mxu0
    %233 = vmatprep.mubr.f32.mxu0 0.0
    %234 = vmatmul.mubr.f32.gmra.mxu0 %v113
    %v235 = vpop.f32.mrf.mxu0
    %v236 = vadd.f32 0.0, %v235
    %v237 = vpop.f32.mrf.mxu0
    %238 = vmatprep.mubr.f32.mxu0 0.0
    %239 = vmatmul.mubr.f32.gmra.mxu0 %v114
    %v240 = vpop.f32.mrf.mxu0
    %v241 = vadd.f32 0.0, %v240
    %v242 = vpop.f32.mrf.mxu0
    %243 = vmatprep.mubr.f32.mxu0 0.0
    %244 = vmatmul.mubr.f32.gmra.mxu0 %v115
    %v245 = vpop.f32.mrf.mxu0
    %v246 = vadd.f32 0.0, %v245
    %v247 = vpop.f32.mrf.mxu0
    %248 = vmatprep.mubr.f32.mxu0 0.0
    %249 = vmatmul.mubr.f32.gmra.mxu0 %v116
    %v250 = vpop.f32.mrf.mxu0
    %v251 = vadd.f32 0.0, %v250
    %v252 = vpop.f32.mrf.mxu0
    %253 = vmatprep.mubr.f32.mxu0 0.0
    %254 = vmatmul.mubr.f32.gmra.mxu0 %v117
    %v255 = vpop.f32.mrf.mxu0
    %v256 = vadd.f32 0.0, %v255
    %v257 = vpop.f32.mrf.mxu0
    %258 = vmatprep.mubr.f32.mxu0 0.0
    %259 = vmatmul.mubr.f32.gmra.mxu0 %v118
    %v260 = vpop.f32.mrf.mxu0
    %v261 = vadd.f32 0.0, %v260
    %v262 = vpop.f32.mrf.mxu0
    %263 = vmatprep.mubr.f32.mxu0 0.0
    %264 = vmatmul.mubr.f32.gmra.mxu0 %v119
    %v265 = vpop.f32.mrf.mxu0
    %v266 = vadd.f32 0.0, %v265
    %v267 = vpop.f32.mrf.mxu0
    %268 = vmatprep.mubr.f32.mxu0 0.0
    %269 = vmatmul.mubr.f32.gmra.mxu0 %v120
    %v270 = vpop.f32.mrf.mxu0
    %v271 = vadd.f32 0.0, %v270
    %v272 = vpop.f32.mrf.mxu0
    %273 = vmatprep.mubr.f32.mxu0 0.0
    %274 = vmatmul.mubr.f32.gmra.mxu0 %v121
    %v275 = vpop.f32.mrf.mxu0
    %v276 = vadd.f32 0.0, %v275
    %v277 = vpop.f32.mrf.mxu0
    %278 = vmatprep.mubr.f32.mxu0 0.0
    %279 = vmatmul.mubr.f32.gmra.mxu0 %v122
    %v280 = vpop.f32.mrf.mxu0
    %v281 = vadd.f32 0.0, %v280
    %v282 = vpop.f32.mrf.mxu0
    %283 = vdwg.mxu0
    %v284 = vmax.f32 %v206, 0.0
    %v285 = vmax.f32 %v211, 0.0
    %v286 = vmax.f32 %v216, 0.0
    %v287 = vmax.f32 %v221, 0.0
    %v288 = vmax.f32 %v226, 0.0
    %v289 = vmax.f32 %v231, 0.0
    %v290 = vmax.f32 %v236, 0.0
    %v291 = vmax.f32 %v241, 0.0
    %v292 = vmax.f32 %v246, 0.0
    %v293 = vmax.f32 %v251, 0.0
    %v294 = vmax.f32 %v256, 0.0
    %v295 = vmax.f32 %v261, 0.0
    %v296 = vmax.f32 %v266, 0.0
    %v297 = vmax.f32 %v271, 0.0
    %v298 = vmax.f32 %v276, 0.0
    %v299 = vmax.f32 %v281, 0.0
    %v300 = vsub.f32 0.0, %v284
    %v301 = vsub.f32 0.0, %v285
    %v302 = vsub.f32 0.0, %v286
    %v303 = vsub.f32 0.0, %v287
    %v304 = vsub.f32 0.0, %v288
    %v305 = vsub.f32 0.0, %v289
    %v306 = vsub.f32 0.0, %v290
    %v307 = vsub.f32 0.0, %v291
    %v308 = vsub.f32 0.0, %v292
    %v309 = vsub.f32 0.0, %v293
    %v310 = vsub.f32 0.0, %v294
    %v311 = vsub.f32 0.0, %v295
    %v312 = vsub.f32 0.0, %v296
    %v313 = vsub.f32 0.0, %v297
    %v314 = vsub.f32 0.0, %v298
    %v315 = vsub.f32 0.0, %v299
    %v316 = vmul.f32 %v300, 0.0009765625
    %v317 = vmul.f32 %v301, 0.0009765625
    %v318 = vmul.f32 %v302, 0.0009765625
    %v319 = vmul.f32 %v303, 0.0009765625
    %v320 = vmul.f32 %v304, 0.0009765625
    %v321 = vmul.f32 %v305, 0.0009765625
    %v322 = vmul.f32 %v306, 0.0009765625
    %v323 = vmul.f32 %v307, 0.0009765625
    %v324 = vmul.f32 %v308, 0.0009765625
    %v325 = vmul.f32 %v309, 0.0009765625
    %v326 = vmul.f32 %v310, 0.0009765625
    %v327 = vmul.f32 %v311, 0.0009765625
    %v328 = vmul.f32 %v312, 0.0009765625
    %v329 = vmul.f32 %v313, 0.0009765625
    %v330 = vmul.f32 %v314, 0.0009765625
    %v331 = vmul.f32 %v315, 0.0009765625
    %v332 = vmul.f32 %v316, 1.442695
    %v333 = vpow.pop %v332
    %v334 = vmul.f32 %v317, 1.442695
    %v335 = vpow.pop %v334
    %v336 = vmul.f32 %v318, 1.442695
    %v337 = vpow.pop %v336
    %v338 = vmul.f32 %v319, 1.442695
    %v339 = vpow.pop %v338
    %v340 = vmul.f32 %v320, 1.442695
    %v341 = vpow.pop %v340
    %v342 = vmul.f32 %v321, 1.442695
    %v343 = vpow.pop %v342
    %v344 = vmul.f32 %v322, 1.442695
    %v345 = vpow.pop %v344
    %v346 = vmul.f32 %v323, 1.442695
    %v347 = vpow.pop %v346
    %v348 = vmul.f32 %v324, 1.442695
    %v349 = vpow.pop %v348
    %v350 = vmul.f32 %v325, 1.442695
    %v351 = vpow.pop %v350
    %v352 = vmul.f32 %v326, 1.442695
    %v353 = vpow.pop %v352
    %v354 = vmul.f32 %v327, 1.442695
    %v355 = vpow.pop %v354
    %v356 = vmul.f32 %v328, 1.442695
    %v357 = vpow.pop %v356
    %v358 = vmul.f32 %v329, 1.442695
    %v359 = vpow.pop %v358
    %v360 = vmul.f32 %v330, 1.442695
    %v361 = vpow.pop %v360
    %v362 = vmul.f32 %v331, 1.442695
    %v363 = vpow.pop %v362
    %v364 = vlaneseq
    %v365 = vshrl.u32 %v364, 7
    %v366 = vld [vmem:[%s88] sm:$0x1]
    %v367 = vlaneseq
    %v368 = vshrl.u32 %v367, 7
    %v369 = vsub.s32 0, %v368
    %v370 = vrot.slane %v366, %v369
    %vm371 = vcmp.eq.s32.totalorder %v365, %v370
    %v372 = vsel %vm371, 1, 0
    %v373 = vcvt.s32.f32 %v372
    %v374 = vlaneseq
    %v375 = vand.u32 %v374, 127
    %v376 = vld [vmem:[%s95] sm:$0xff]
    %v377 = vld [vmem:[%s95 + $0x8] sm:$0xff]
    %v378 = vld [vmem:[%s95 + $0x10] sm:$0xff]
    %v379 = vld [vmem:[%s95 + $0x18] sm:$0xff]
    %v380 = vld [vmem:[%s95 + $0x20] sm:$0xff]
    %v381 = vld [vmem:[%s95 + $0x28] sm:$0xff]
    %v382 = vld [vmem:[%s95 + $0x30] sm:$0xff]
    %v383 = vld [vmem:[%s95 + $0x38] sm:$0xff]
    %v384 = vld [vmem:[%s95 + $0x40] sm:$0xff]
    %v385 = vld [vmem:[%s95 + $0x48] sm:$0xff]
    %v386 = vld [vmem:[%s95 + $0x50] sm:$0xff]
    %v387 = vld [vmem:[%s95 + $0x58] sm:$0xff]
    %v388 = vld [vmem:[%s95 + $0x60] sm:$0xff]
    %v389 = vld [vmem:[%s95 + $0x68] sm:$0xff]
    %v390 = vld [vmem:[%s95 + $0x70] sm:$0xff]
    %v391 = vld [vmem:[%s95 + $0x78] sm:$0xff]
    %392 = vset.pattern.permute.xlu0 0
    %393 = vperm.xlu0 %392, %v376
    %v394 = vpop.permute.xlu0 %393
    %395 = vset.pattern.permute.xlu0 0
    %396 = vperm.xlu0 %395, %v377
    %v397 = vpop.permute.xlu0 %396
    %398 = vset.pattern.permute.xlu0 0
    %399 = vperm.xlu0 %398, %v378
    %v400 = vpop.permute.xlu0 %399
    %401 = vset.pattern.permute.xlu0 0
    %402 = vperm.xlu0 %401, %v379
    %v403 = vpop.permute.xlu0 %402
    %404 = vset.pattern.permute.xlu0 0
    %405 = vperm.xlu0 %404, %v380
    %v406 = vpop.permute.xlu0 %405
    %407 = vset.pattern.permute.xlu0 0
    %408 = vperm.xlu0 %407, %v381
    %v409 = vpop.permute.xlu0 %408
    %410 = vset.pattern.permute.xlu0 0
    %411 = vperm.xlu0 %410, %v382
    %v412 = vpop.permute.xlu0 %411
    %413 = vset.pattern.permute.xlu0 0
    %414 = vperm.xlu0 %413, %v383
    %v415 = vpop.permute.xlu0 %414
    %416 = vset.pattern.permute.xlu0 0
    %417 = vperm.xlu0 %416, %v384
    %v418 = vpop.permute.xlu0 %417
    %419 = vset.pattern.permute.xlu0 0
    %420 = vperm.xlu0 %419, %v385
    %v421 = vpop.permute.xlu0 %420
    %422 = vset.pattern.permute.xlu0 0
    %423 = vperm.xlu0 %422, %v386
    %v424 = vpop.permute.xlu0 %423
    %425 = vset.pattern.permute.xlu0 0
    %426 = vperm.xlu0 %425, %v387
    %v427 = vpop.permute.xlu0 %426
    %428 = vset.pattern.permute.xlu0 0
    %429 = vperm.xlu0 %428, %v388
    %v430 = vpop.permute.xlu0 %429
    %431 = vset.pattern.permute.xlu0 0
    %432 = vperm.xlu0 %431, %v389
    %v433 = vpop.permute.xlu0 %432
    %434 = vset.pattern.permute.xlu0 0
    %435 = vperm.xlu0 %434, %v390
    %v436 = vpop.permute.xlu0 %435
    %437 = vset.pattern.permute.xlu0 0
    %438 = vperm.xlu0 %437, %v391
    %v439 = vpop.permute.xlu0 %438
    %vm440 = vcmp.eq.s32.totalorder %v375, %v394
    %vm441 = vcmp.eq.s32.totalorder %v375, %v397
    %vm442 = vcmp.eq.s32.totalorder %v375, %v400
    %vm443 = vcmp.eq.s32.totalorder %v375, %v403
    %vm444 = vcmp.eq.s32.totalorder %v375, %v406
    %vm445 = vcmp.eq.s32.totalorder %v375, %v409
    %vm446 = vcmp.eq.s32.totalorder %v375, %v412
    %vm447 = vcmp.eq.s32.totalorder %v375, %v415
    %vm448 = vcmp.eq.s32.totalorder %v375, %v418
    %vm449 = vcmp.eq.s32.totalorder %v375, %v421
    %vm450 = vcmp.eq.s32.totalorder %v375, %v424
    %vm451 = vcmp.eq.s32.totalorder %v375, %v427
    %vm452 = vcmp.eq.s32.totalorder %v375, %v430
    %vm453 = vcmp.eq.s32.totalorder %v375, %v433
    %vm454 = vcmp.eq.s32.totalorder %v375, %v436
    %vm455 = vcmp.eq.s32.totalorder %v375, %v439
    %v456 = vsel %vm440, 1, 0
    %v457 = vsel %vm441, 1, 0
    %v458 = vsel %vm442, 1, 0
    %v459 = vsel %vm443, 1, 0
    %v460 = vsel %vm444, 1, 0
    %v461 = vsel %vm445, 1, 0
    %v462 = vsel %vm446, 1, 0
    %v463 = vsel %vm447, 1, 0
    %v464 = vsel %vm448, 1, 0
    %v465 = vsel %vm449, 1, 0
    %v466 = vsel %vm450, 1, 0
    %v467 = vsel %vm451, 1, 0
    %v468 = vsel %vm452, 1, 0
    %v469 = vsel %vm453, 1, 0
    %v470 = vsel %vm454, 1, 0
    %v471 = vsel %vm455, 1, 0
    %v472 = vcvt.s32.f32 %v456
    %v473 = vcvt.s32.f32 %v457
    %v474 = vcvt.s32.f32 %v458
    %v475 = vcvt.s32.f32 %v459
    %v476 = vcvt.s32.f32 %v460
    %v477 = vcvt.s32.f32 %v461
    %v478 = vcvt.s32.f32 %v462
    %v479 = vcvt.s32.f32 %v463
    %v480 = vcvt.s32.f32 %v464
    %v481 = vcvt.s32.f32 %v465
    %v482 = vcvt.s32.f32 %v466
    %v483 = vcvt.s32.f32 %v467
    %v484 = vcvt.s32.f32 %v468
    %v485 = vcvt.s32.f32 %v469
    %v486 = vcvt.s32.f32 %v470
    %v487 = vcvt.s32.f32 %v471
    %488 = vmatprep.subr.mxu0 0.0
    %489 = vmatpush1.msra.mxu0 %v363
    %490 = vmatprep.subr.mxu0 0.0
    %491 = vmatpush1.msra.mxu0 %v361
    %492 = vmatprep.subr.mxu0 0.0
    %493 = vmatpush1.msra.mxu0 %v359
    %494 = vmatprep.subr.mxu0 0.0
    %495 = vmatpush1.msra.mxu0 %v357
    %496 = vmatprep.subr.mxu0 0.0
    %497 = vmatpush1.msra.mxu0 %v355
    %498 = vmatprep.subr.mxu0 0.0
    %499 = vmatpush1.msra.mxu0 %v353
    %500 = vmatprep.subr.mxu0 0.0
    %501 = vmatpush1.msra.mxu0 %v351
    %502 = vmatprep.subr.mxu0 0.0
    %503 = vmatpush1.msra.mxu0 %v349
    %504 = vmatprep.subr.mxu0 0.0
    %505 = vmatpush1.msra.mxu0 %v347
    %506 = vmatprep.subr.mxu0 0.0
    %507 = vmatpush1.msra.mxu0 %v345
    %508 = vmatprep.subr.mxu0 0.0
    %509 = vmatpush1.msra.mxu0 %v343
    %510 = vmatprep.subr.mxu0 0.0
    %511 = vmatpush1.msra.mxu0 %v341
    %512 = vmatprep.subr.mxu0 0.0
    %513 = vmatpush1.msra.mxu0 %v339
    %514 = vmatprep.subr.mxu0 0.0
    %515 = vmatpush1.msra.mxu0 %v337
    %516 = vmatprep.subr.mxu0 0.0
    %517 = vmatpush1.msra.mxu0 %v335
    %518 = vmatprep.subr.mxu0 0.0
    %519 = vmatpush1.msra.mxu0 %v333
    %520 = vmatprep.subr.mxu0 0.0
    %521 = vmatpush2.msra.mxu0 0.0
    %522 = vmatprep.subr.mxu0 0.0
    %523 = vmatpush2.msra.mxu0 0.0
    %524 = vmatprep.subr.mxu0 0.0
    %525 = vmatpush2.msra.mxu0 0.0
    %526 = vmatprep.subr.mxu0 0.0
    %527 = vmatpush2.msra.mxu0 0.0
    %528 = vmatprep.subr.mxu0 0.0
    %529 = vmatpush2.msra.mxu0 0.0
    %530 = vmatprep.subr.mxu0 0.0
    %531 = vmatpush2.msra.mxu0 0.0
    %532 = vmatprep.subr.mxu0 0.0
    %533 = vmatpush2.msra.mxu0 0.0
    %534 = vmatprep.subr.mxu0 0.0
    %535 = vmatpush2.msra.mxu0 0.0
    %536 = vmatprep.subr.mxu0 0.0
    %537 = vmatpush2.msra.mxu0 0.0
    %538 = vmatprep.subr.mxu0 0.0
    %539 = vmatpush2.msra.mxu0 0.0
    %540 = vmatprep.subr.mxu0 0.0
    %541 = vmatpush2.msra.mxu0 0.0
    %542 = vmatprep.subr.mxu0 0.0
    %543 = vmatpush2.msra.mxu0 0.0
    %544 = vmatprep.subr.mxu0 0.0
    %545 = vmatpush2.msra.mxu0 0.0
    %546 = vmatprep.subr.mxu0 0.0
    %547 = vmatpush2.msra.mxu0 0.0
    %548 = vmatprep.subr.mxu0 0.0
    %549 = vmatpush2.msra.mxu0 0.0
    %550 = vmatprep.subr.mxu0 0.0
    %551 = vmatpush2.msra.mxu0 0.0
    %552 = vmatprep.mubr.f32.mxu0 0.0
    %553 = vmatmul.mubr.f32.gmra.mxu0 %v373
    %v554 = vpop.f32.mrf.mxu0
    %v555 = vadd.f32 0.0, %v554
    %v556 = vpop.f32.mrf.mxu0
    %557 = vdwg.mxu0
    %558 = vmatprep.subr.mxu0 0.0
    %559 = vmatpush1.msra.mxu0 %v487
    %560 = vmatprep.subr.mxu0 0.0
    %561 = vmatpush1.msra.mxu0 %v486
    %562 = vmatprep.subr.mxu0 0.0
    %563 = vmatpush1.msra.mxu0 %v485
    %564 = vmatprep.subr.mxu0 0.0
    %565 = vmatpush1.msra.mxu0 %v484
    %566 = vmatprep.subr.mxu0 0.0
    %567 = vmatpush1.msra.mxu0 %v483
    %568 = vmatprep.subr.mxu0 0.0
    %569 = vmatpush1.msra.mxu0 %v482
    %570 = vmatprep.subr.mxu0 0.0
    %571 = vmatpush1.msra.mxu0 %v481
    %572 = vmatprep.subr.mxu0 0.0
    %573 = vmatpush1.msra.mxu0 %v480
    %574 = vmatprep.subr.mxu0 0.0
    %575 = vmatpush1.msra.mxu0 %v479
    %576 = vmatprep.subr.mxu0 0.0
    %577 = vmatpush1.msra.mxu0 %v478
    %578 = vmatprep.subr.mxu0 0.0
    %579 = vmatpush1.msra.mxu0 %v477
    %580 = vmatprep.subr.mxu0 0.0
    %581 = vmatpush1.msra.mxu0 %v476
    %582 = vmatprep.subr.mxu0 0.0
    %583 = vmatpush1.msra.mxu0 %v475
    %584 = vmatprep.subr.mxu0 0.0
    %585 = vmatpush1.msra.mxu0 %v474
    %586 = vmatprep.subr.mxu0 0.0
    %587 = vmatpush1.msra.mxu0 %v473
    %588 = vmatprep.subr.mxu0 0.0
    %589 = vmatpush1.msra.mxu0 %v472
    %590 = vmatprep.subr.mxu0 0.0
    %591 = vmatpush2.msra.mxu0 0.0
    %592 = vmatprep.subr.mxu0 0.0
    %593 = vmatpush2.msra.mxu0 0.0
    %594 = vmatprep.subr.mxu0 0.0
    %595 = vmatpush2.msra.mxu0 0.0
    %596 = vmatprep.subr.mxu0 0.0
    %597 = vmatpush2.msra.mxu0 0.0
    %598 = vmatprep.subr.mxu0 0.0
    %599 = vmatpush2.msra.mxu0 0.0
    %600 = vmatprep.subr.mxu0 0.0
    %601 = vmatpush2.msra.mxu0 0.0
    %602 = vmatprep.subr.mxu0 0.0
    %603 = vmatpush2.msra.mxu0 0.0
    %604 = vmatprep.subr.mxu0 0.0
    %605 = vmatpush2.msra.mxu0 0.0
    %606 = vmatprep.subr.mxu0 0.0
    %607 = vmatpush2.msra.mxu0 0.0
    %608 = vmatprep.subr.mxu0 0.0
    %609 = vmatpush2.msra.mxu0 0.0
    %610 = vmatprep.subr.mxu0 0.0
    %611 = vmatpush2.msra.mxu0 0.0
    %612 = vmatprep.subr.mxu0 0.0
    %613 = vmatpush2.msra.mxu0 0.0
    %614 = vmatprep.subr.mxu0 0.0
    %615 = vmatpush2.msra.mxu0 0.0
    %616 = vmatprep.subr.mxu0 0.0
    %617 = vmatpush2.msra.mxu0 0.0
    %618 = vmatprep.subr.mxu0 0.0
    %619 = vmatpush2.msra.mxu0 0.0
    %620 = vmatprep.subr.mxu0 0.0
    %621 = vmatpush2.msra.mxu0 0.0
    %622 = vmatprep.mubr.f32.mxu0 0.0
    %623 = vmatmul.mubr.f32.gmra.mxu0 %v555
    %v624 = vpop.f32.mrf.mxu0
    %v625 = vadd.f32 0.0, %v624
    %v626 = vpop.f32.mrf.mxu0
    %627 = vdwg.mxu0
    %p628 = scmp.lt.s32.totalorder %s100, %s99
    %s629 = scalar_select %p628, 1, 0
    %s630 = scvt.s32.f32 %s629
    %v631 = vld [vmem:[#allocation8] sm:$0xff]
    %632 = vxpose.xlu0.b32.start [1/16] %v625, 128
    %633 = vxpose.xlu0.b32.cont [2/16] 0.0, 128
    %634 = vxpose.xlu0.b32.cont [3/16] 0.0, 128
    %635 = vxpose.xlu0.b32.cont [4/16] 0.0, 128
    %636 = vxpose.xlu0.b32.cont [5/16] 0.0, 128
    %637 = vxpose.xlu0.b32.cont [6/16] 0.0, 128
    %638 = vxpose.xlu0.b32.cont [7/16] 0.0, 128
    %639 = vxpose.xlu0.b32.cont [8/16] 0.0, 128
    %640 = vxpose.xlu0.b32.cont [9/16] 0.0, 128
    %641 = vxpose.xlu0.b32.cont [10/16] 0.0, 128
    %642 = vxpose.xlu0.b32.cont [11/16] 0.0, 128
    %643 = vxpose.xlu0.b32.cont [12/16] 0.0, 128
    %644 = vxpose.xlu0.b32.cont [13/16] 0.0, 128
    %645 = vxpose.xlu0.b32.cont [14/16] 0.0, 128
    %646 = vxpose.xlu0.b32.cont [15/16] 0.0, 128
    %647 = vxpose.xlu0.b32.end [16/16] 0.0, 128
    %v648 = vpop.trf.xlu0
    %v649 = vpop.trf.xlu0
    %v650 = vpop.trf.xlu0
    %v651 = vpop.trf.xlu0
    %v652 = vpop.trf.xlu0
    %v653 = vpop.trf.xlu0
    %v654 = vpop.trf.xlu0
    %v655 = vpop.trf.xlu0
    %v656 = vpop.trf.xlu0
    %v657 = vpop.trf.xlu0
    %v658 = vpop.trf.xlu0
    %v659 = vpop.trf.xlu0
    %v660 = vpop.trf.xlu0
    %v661 = vpop.trf.xlu0
    %v662 = vpop.trf.xlu0
    %v663 = vpop.trf.xlu0
    %v664 = vstv %s630
    %v665 = vmul.f32 %v664, %v648
    %v666 = vadd.f32 %v625, %v665
    %v667 = vadd.f32 %v631, %v666
    %vm668 = vcmask 64512
    %669 = vst.msk [vmem:[#allocation8] sm:$0xff] %vm668, %v667
    // Predicated region
    $region26: #{tpu_custom_call.1} parent=1 // pred_check
      _
    $region27: #{tpu_custom_call.1} parent=1 // pred_check_branch
      %671 = sbr.rel (0) target = $region29
    $region28: #{tpu_custom_call.1} parent=1 // pred_region
      %s672 = sld [smem:[#allocation3]]
      %s674 = ssub.s32 128, 128
      %675 = vsyncadd [#allocation7], %s674
      %s676 = smul.addr %s672, 128
      %s677 = scalar_lea.hbm %s6, %s676
      %s679 = sshll.u32 [#allocation8], 4
      %s680 = int_to_ptr.vmem [resolvable:$true] %s679
      %682 = dma.vmem_to_hbm [thread:$0]  %s680, 128, %s677, [#allocation7]
    $region29: #{tpu_custom_call.1} parent=1 // pred_fallthru
      _
    // Predicated region
    $region30: #{tpu_custom_call.1} parent=1 // pred_check
      _
    $region31: #{tpu_custom_call.1} parent=1 // pred_check_branch
      %684 = sbr.rel (0) target = $region33
    $region32: #{tpu_custom_call.1} parent=1 // pred_region
      %685 = dma.done [#allocation7], 128
    $region33: #{tpu_custom_call.1} parent=1 // pred_fallthru
      _
    %686 = vsyncpa [#allocation6], 1
    %687 = vsyncpa [#allocation7], 1

</llo_original>
